<compile_context>
chip_gen: v6e
topology: v6e:2x2x1
jax: 0.10.0
libtpu: 0.0.40
codegen_flags: <defaults>
</compile_context>

<pallas_src>
import functools

import jax
import jax.numpy as jnp
from jax.experimental import pallas as pl
from jax.experimental.pallas import tpu as pltpu

LANE = 128       # lane width (last dim)
SUBLANE = 8      # f32 sublane width (second-to-last dim)


def _round_up(x, m):
    return (x + m - 1) // m * m


def mlp_kernel(x_ref, w1_ref, b1_ref, w2_ref, b2_ref, w3_ref, b3_ref, o_ref):
    # hidden1: (TB, K)   @ (K, 128)   + (1, 128)
    h1 = jnp.dot(x_ref[...], w1_ref[...],
                 preferred_element_type=jnp.float32) + b1_ref[...]
    # hidden2: (TB, 128) @ (128, 128) + (1, 128)
    h2 = jnp.dot(h1, w2_ref[...],
                 preferred_element_type=jnp.float32) + b2_ref[...]
    # output:  (TB, 128) @ (128, 128) + (1, 128)
    out = jnp.dot(h2, w3_ref[...],
                  preferred_element_type=jnp.float32) + b3_ref[...]
    o_ref[...] = out.astype(o_ref.dtype)


@functools.partial(jax.jit, static_argnames=())
def mlp_forward(x, w1, b1, w2, b2, w3, b3):
    """Forward pass of NN (three Linear layers, no activations — matches the torch spec).

    x:  (B, n_state) f32
    w1: (n_state, 100), b1: (1, 100)
    w2: (100, 100),     b2: (1, 100)
    w3: (100, n_actions), b3: (1, n_actions)
    returns (B, n_actions) f32
    """
    B, K = x.shape
    H = w1.shape[1]             # 100
    A = w3.shape[1]             # n_actions
    HP = _round_up(H, LANE)     # 128 -> lane-dense hidden
    AP = _round_up(A, LANE)     # 128 -> lane-dense output

    # Batch tile: multiple of the f32 sublane, capped so per-tile VMEM stays small.
    TB = min(512, _round_up(B, SUBLANE))
    BP = _round_up(B, TB)

    # Zero-pad to lane/sublane-dense layouts; padded rows/cols are zero so the
    # result in the real rows/columns is exact.
    xp = jnp.zeros((BP, K), jnp.float32).at[:B, :].set(x.astype(jnp.float32))
    w1p = jnp.zeros((K, HP), jnp.float32).at[:, :H].set(w1)
    b1p = jnp.zeros((1, HP), jnp.float32).at[:, :H].set(b1)
    w2p = jnp.zeros((HP, HP), jnp.float32).at[:H, :H].set(w2)
    b2p = jnp.zeros((1, HP), jnp.float32).at[:, :H].set(b2)
    w3p = jnp.zeros((HP, AP), jnp.float32).at[:H, :A].set(w3)
    b3p = jnp.zeros((1, AP), jnp.float32).at[:, :A].set(b3)

    grid = (BP // TB,)

    # Weights/biases: full-array blocks, constant index_map -> resident in VMEM
    # across all batch tiles (only x / out are streamed & double-buffered).
    def resident(shape):
        return pl.BlockSpec(shape, lambda i, _n=len(shape): (0,) * _n)

    flops = 2 * BP * (K * HP + HP * HP + HP * AP)
    bytes_accessed = 4 * (BP * K + K * HP + HP * HP + HP * AP + 3 * HP + BP * AP)

    y = pl.pallas_call(
        mlp_kernel,
        out_shape=jax.ShapeDtypeStruct((BP, AP), jnp.float32),
        grid=grid,
        in_specs=[
            pl.BlockSpec((TB, K), lambda i: (i, 0)),   # streamed activations
            resident((K, HP)), resident((1, HP)),
            resident((HP, HP)), resident((1, HP)),
            resident((HP, AP)), resident((1, AP)),
        ],
        out_specs=pl.BlockSpec((TB, AP), lambda i: (i, 0)),
        compiler_params=pltpu.CompilerParams(
            dimension_semantics=("parallel",),
        ),
        cost_estimate=pl.CostEstimate(
            flops=flops, transcendentals=0, bytes_accessed=bytes_accessed),
    )(xp, w1p, b1p, w2p, b2p, w3p, b3p)

    # Slice the real batch rows and real action columns back out.
    return y[:B, :A]


def init_params(key, n_state, n_actions, hidden=100):
    """Deterministic init mimicking torch.nn.Linear (uniform(-1/sqrt(fan_in), 1/sqrt(fan_in)))."""
    ks = jax.random.split(key, 6)

    def linear(kw, kb, fan_in, fan_out):
        bound = 1.0 / jnp.sqrt(jnp.float32(fan_in))
        w = jax.random.uniform(kw, (fan_in, fan_out), jnp.float32, -bound, bound)
        b = jax.random.uniform(kb, (1, fan_out), jnp.float32, -bound, bound)
        return w, b

    w1, b1 = linear(ks[0], ks[1], n_state, hidden)
    w2, b2 = linear(ks[2], ks[3], hidden, hidden)
    w3, b3 = linear(ks[4], ks[5], hidden, n_actions)
    return w1, b1, w2, b2, w3, b3


if __name__ == "__main__":
    n_state = 8
    n_actions = 4
    batch = 2

    key = jax.random.PRNGKey(0)
    kx, kp = jax.random.split(key)
    x = jax.random.normal(kx, (batch, n_state), jnp.float32)
    params = init_params(kp, n_state, n_actions)

    out = mlp_forward(x, *params)
    out = jax.block_until_ready(out)

    # Reference check in plain JAX (no activations, per the torch forward).
    w1, b1, w2, b2, w3, b3 = params
    ref = ((x @ w1 + b1) @ w2 + b2) @ w3 + b3
    assert out.shape == (batch, n_actions)
    assert jnp.allclose(out, ref, atol=1e-4, rtol=1e-4)

    # NOTE: predict_proba / fit are host-side numpy / training utilities, not part
    # of the forward pass, so they are intentionally not kernelized.
    print("KERNEL_OK")
</pallas_src>

<mosaic_0001>
module attributes {stable_mosaic.version = 11 : i64} {
  func.func @mlp_kernel(%arg0: i32, %arg1: memref<8x8xf32, #tpu.memory_space<vmem>>, %arg2: memref<8x128xf32, #tpu.memory_space<vmem>>, %arg3: memref<1x128xf32, #tpu.memory_space<vmem>>, %arg4: memref<128x128xf32, #tpu.memory_space<vmem>>, %arg5: memref<1x128xf32, #tpu.memory_space<vmem>>, %arg6: memref<128x128xf32, #tpu.memory_space<vmem>>, %arg7: memref<1x128xf32, #tpu.memory_space<vmem>>, %arg8: memref<8x128xf32, #tpu.memory_space<vmem>>) attributes {dimension_semantics = [#tpu.dimension_semantics<parallel>], iteration_bounds = array<i64: 1>, scalar_prefetch = 0 : i64, scratch_operands = 0 : i64, tpu.core_type = #tpu.core_type<tc>, window_params = [{transform_indices = @transform_0, window_bounds = array<i64: 8, 8>}, {pipeline_mode = #tpu.pipeline_mode<synchronous>, transform_indices = @transform_1, window_bounds = array<i64: 8, 128>}, {pipeline_mode = #tpu.pipeline_mode<synchronous>, transform_indices = @transform_2, window_bounds = array<i64: 1, 128>}, {pipeline_mode = #tpu.pipeline_mode<synchronous>, transform_indices = @transform_3, window_bounds = array<i64: 128, 128>}, {pipeline_mode = #tpu.pipeline_mode<synchronous>, transform_indices = @transform_4, window_bounds = array<i64: 1, 128>}, {pipeline_mode = #tpu.pipeline_mode<synchronous>, transform_indices = @transform_5, window_bounds = array<i64: 128, 128>}, {pipeline_mode = #tpu.pipeline_mode<synchronous>, transform_indices = @transform_6, window_bounds = array<i64: 1, 128>}, {transform_indices = @transform_7, window_bounds = array<i64: 8, 128>}]} {
    %c0 = arith.constant 0 : index
    %c0_0 = arith.constant 0 : index
    %0 = vector.load %arg1[%c0, %c0_0] : memref<8x8xf32, #tpu.memory_space<vmem>>, vector<8x8xf32>
    %c0_1 = arith.constant 0 : index
    %c0_2 = arith.constant 0 : index
    %1 = vector.load %arg2[%c0_1, %c0_2] : memref<8x128xf32, #tpu.memory_space<vmem>>, vector<8x128xf32>
    %cst = arith.constant dense<0.000000e+00> : vector<8x128xf32>
    %2 = tpu.matmul %0, %1, %cst {dimension_numbers = #tpu.dot_dimension_numbers<[1], [0], [0], [1], [0, 0, 1, 1], [], []>} : vector<8x8xf32>, vector<8x128xf32>, vector<8x128xf32> -> vector<8x128xf32>
    %c0_3 = arith.constant 0 : index
    %c0_4 = arith.constant 0 : index
    %3 = vector.load %arg3[%c0_3, %c0_4] : memref<1x128xf32, #tpu.memory_space<vmem>>, vector<1x128xf32>
    %4 = vector.broadcast %3 : vector<1x128xf32> to vector<8x128xf32>
    %5 = arith.addf %2, %4 : vector<8x128xf32>
    %c0_5 = arith.constant 0 : index
    %c0_6 = arith.constant 0 : index
    %6 = vector.load %arg4[%c0_5, %c0_6] : memref<128x128xf32, #tpu.memory_space<vmem>>, vector<128x128xf32>
    %cst_7 = arith.constant dense<0.000000e+00> : vector<8x128xf32>
    %7 = tpu.matmul %5, %6, %cst_7 {dimension_numbers = #tpu.dot_dimension_numbers<[1], [0], [0], [1], [0, 0, 1, 1], [], []>} : vector<8x128xf32>, vector<128x128xf32>, vector<8x128xf32> -> vector<8x128xf32>
    %c0_8 = arith.constant 0 : index
    %c0_9 = arith.constant 0 : index
    %8 = vector.load %arg5[%c0_8, %c0_9] : memref<1x128xf32, #tpu.memory_space<vmem>>, vector<1x128xf32>
    %9 = vector.broadcast %8 : vector<1x128xf32> to vector<8x128xf32>
    %10 = arith.addf %7, %9 : vector<8x128xf32>
    %c0_10 = arith.constant 0 : index
    %c0_11 = arith.constant 0 : index
    %11 = vector.load %arg6[%c0_10, %c0_11] : memref<128x128xf32, #tpu.memory_space<vmem>>, vector<128x128xf32>
    %cst_12 = arith.constant dense<0.000000e+00> : vector<8x128xf32>
    %12 = tpu.matmul %10, %11, %cst_12 {dimension_numbers = #tpu.dot_dimension_numbers<[1], [0], [0], [1], [0, 0, 1, 1], [], []>} : vector<8x128xf32>, vector<128x128xf32>, vector<8x128xf32> -> vector<8x128xf32>
    %c0_13 = arith.constant 0 : index
    %c0_14 = arith.constant 0 : index
    %13 = vector.load %arg7[%c0_13, %c0_14] : memref<1x128xf32, #tpu.memory_space<vmem>>, vector<1x128xf32>
    %14 = vector.broadcast %13 : vector<1x128xf32> to vector<8x128xf32>
    %15 = arith.addf %12, %14 : vector<8x128xf32>
    %c0_15 = arith.constant 0 : index
    %c0_16 = arith.constant 0 : index
    %16 = vector.load %arg8[%c0_15, %c0_16] : memref<8x128xf32, #tpu.memory_space<vmem>>, vector<8x128xf32>
    tpu.vector_store %arg8[%c0_15, %c0_16], %15 {strides = array<i32>} : memref<8x128xf32, #tpu.memory_space<vmem>>, vector<8x128xf32>,
    return
  }
  func.func @transform_0(%arg0: i32) -> (i32, i32) {
    %c0_i32 = arith.constant 0 : i32
    %c0_i32_0 = arith.constant 0 : i32
    return %arg0, %c0_i32 : i32, i32
  }
  func.func @transform_1(%arg0: i32) -> (i32, i32) {
    %c0_i32 = arith.constant 0 : i32
    %c0_i32_0 = arith.constant 0 : i32
    %c0_i32_1 = arith.constant 0 : i32
    return %c0_i32, %c0_i32_0 : i32, i32
  }
  func.func @transform_2(%arg0: i32) -> (i32, i32) {
    %c0_i32 = arith.constant 0 : i32
    %c0_i32_0 = arith.constant 0 : i32
    %c0_i32_1 = arith.constant 0 : i32
    return %c0_i32, %c0_i32_0 : i32, i32
  }
  func.func @transform_3(%arg0: i32) -> (i32, i32) {
    %c0_i32 = arith.constant 0 : i32
    %c0_i32_0 = arith.constant 0 : i32
    %c0_i32_1 = arith.constant 0 : i32
    return %c0_i32, %c0_i32_0 : i32, i32
  }
  func.func @transform_4(%arg0: i32) -> (i32, i32) {
    %c0_i32 = arith.constant 0 : i32
    %c0_i32_0 = arith.constant 0 : i32
    %c0_i32_1 = arith.constant 0 : i32
    return %c0_i32, %c0_i32_0 : i32, i32
  }
  func.func @transform_5(%arg0: i32) -> (i32, i32) {
    %c0_i32 = arith.constant 0 : i32
    %c0_i32_0 = arith.constant 0 : i32
    %c0_i32_1 = arith.constant 0 : i32
    return %c0_i32, %c0_i32_0 : i32, i32
  }
  func.func @transform_6(%arg0: i32) -> (i32, i32) {
    %c0_i32 = arith.constant 0 : i32
    %c0_i32_0 = arith.constant 0 : i32
    %c0_i32_1 = arith.constant 0 : i32
    return %c0_i32, %c0_i32_0 : i32, i32
  }
  func.func @transform_7(%arg0: i32) -> (i32, i32) {
    %c0_i32 = arith.constant 0 : i32
    %c0_i32_0 = arith.constant 0 : i32
    return %arg0, %c0_i32 : i32, i32
  }
}

</mosaic_0001>

<llo_original>
// kernel: mlp_forward.1
$region0: #{mlp_forward.1}
  #allocation0 [shape = 'u32[]', space=smem, size = 0x4, offset = 0x4, fixed_abs, tag = 'smem constant byte address 0x4 - core index']
  #allocation1 [shape = 'u32[144,128]{1,0:T(1,128)}', space=vmem, size = 0x12000, scoped, tag = 'internal scratch']
  %s0 = inlined_call_operand.vmem [shape: f32[8,8], index: 0, kind: input, shape index: {}]
  %s1 = inlined_call_operand.vmem [shape: f32[8,128], index: 1, kind: input, shape index: {}]
  %s2 = inlined_call_operand.vmem [shape: f32[1,128], index: 2, kind: input, shape index: {}]
  %s3 = inlined_call_operand.vmem [shape: f32[128,128], index: 3, kind: input, shape index: {}]
  %s4 = inlined_call_operand.vmem [shape: f32[1,128], index: 4, kind: input, shape index: {}]
  %s5 = inlined_call_operand.vmem [shape: f32[128,128], index: 5, kind: input, shape index: {}]
  %s6 = inlined_call_operand.vmem [shape: f32[1,128], index: 6, kind: input, shape index: {}]
  %s7 = inlined_call_operand.vmem [shape: f32[8,128], index: 7, kind: output, shape index: {}]
  %s8 = sld [smem:[#allocation0]]
  $region38: #{mlp_forward.1} parent=0
    _
  %s10 = ssub.s32 1, %s8
  %s11 = scalar_select 0, %s10, %s8
  // Predicated region
  $region2: #{mlp_forward.1} parent=0 // pred_check
    _
  $region3: #{mlp_forward.1} parent=0 // pred_check_branch
    %13 = sbr.rel (0) target = $region5
  $region4: #{mlp_forward.1} parent=0 // pred_region
    _
  $region5: #{mlp_forward.1} parent=0 // pred_fallthru
    _
  // Predicated region
  $region6: #{mlp_forward.1} parent=0 // pred_check
    _
  $region7: #{mlp_forward.1} parent=0 // pred_check_branch
    %15 = sbr.rel (0) target = $region9
  $region8: #{mlp_forward.1} parent=0 // pred_region
    _
  $region9: #{mlp_forward.1} parent=0 // pred_fallthru
    _
  // Predicated region
  $region10: #{mlp_forward.1} parent=0 // pred_check
    _
  $region11: #{mlp_forward.1} parent=0 // pred_check_branch
    %17 = sbr.rel (0) target = $region13
  $region12: #{mlp_forward.1} parent=0 // pred_region
    _
  $region13: #{mlp_forward.1} parent=0 // pred_fallthru
    _
  // Predicated region
  $region14: #{mlp_forward.1} parent=0 // pred_check
    _
  $region15: #{mlp_forward.1} parent=0 // pred_check_branch
    %19 = sbr.rel (0) target = $region17
  $region16: #{mlp_forward.1} parent=0 // pred_region
    _
  $region17: #{mlp_forward.1} parent=0 // pred_fallthru
    _
  // Predicated region
  $region18: #{mlp_forward.1} parent=0 // pred_check
    _
  $region19: #{mlp_forward.1} parent=0 // pred_check_branch
    %21 = sbr.rel (0) target = $region21
  $region20: #{mlp_forward.1} parent=0 // pred_region
    _
  $region21: #{mlp_forward.1} parent=0 // pred_fallthru
    _
  // Predicated region
  $region22: #{mlp_forward.1} parent=0 // pred_check
    _
  $region23: #{mlp_forward.1} parent=0 // pred_check_branch
    %23 = sbr.rel (0) target = $region25
  $region24: #{mlp_forward.1} parent=0 // pred_region
    _
  $region25: #{mlp_forward.1} parent=0 // pred_fallthru
    _
  // Predicated region
  $region26: #{mlp_forward.1} parent=0 // pred_check
    _
  $region27: #{mlp_forward.1} parent=0 // pred_check_branch
    %25 = sbr.rel (0) target = $region29
  $region28: #{mlp_forward.1} parent=0 // pred_region
    _
  $region29: #{mlp_forward.1} parent=0 // pred_fallthru
    _
  %v26 = vld [vmem:[%s0] sm:$0xff]
  %v27 = vld [vmem:[%s1] sm:$0xff]
  %v28 = vld [vmem:[%s2] sm:$0x1]
  %v30 = vlaneseq
  %v31 = vshrl.u32 %v30, 7
  %v32 = vsub.s32 0, %v31
  %v33 = vrot.slane %v28, %v32
  %vm35 = vcmask 64512
  %v37 = vsel %vm35, %v26, 0
  %39 = vmatprep.subr.mxu0 0.0
  %40 = vmatpush1.msra.mxu0 0.0
  %41 = vmatprep.subr.mxu0 0.0
  %42 = vmatpush1.msra.mxu0 0.0
  %43 = vmatprep.subr.mxu0 0.0
  %44 = vmatpush1.msra.mxu0 0.0
  %45 = vmatprep.subr.mxu0 0.0
  %46 = vmatpush1.msra.mxu0 0.0
  %47 = vmatprep.subr.mxu0 0.0
  %48 = vmatpush1.msra.mxu0 0.0
  %49 = vmatprep.subr.mxu0 0.0
  %50 = vmatpush1.msra.mxu0 0.0
  %51 = vmatprep.subr.mxu0 0.0
  %52 = vmatpush1.msra.mxu0 0.0
  %53 = vmatprep.subr.mxu0 0.0
  %54 = vmatpush1.msra.mxu0 0.0
  %55 = vmatprep.subr.mxu0 0.0
  %56 = vmatpush1.msra.mxu0 0.0
  %57 = vmatprep.subr.mxu0 0.0
  %58 = vmatpush1.msra.mxu0 0.0
  %59 = vmatprep.subr.mxu0 0.0
  %60 = vmatpush1.msra.mxu0 0.0
  %61 = vmatprep.subr.mxu0 0.0
  %62 = vmatpush1.msra.mxu0 0.0
  %63 = vmatprep.subr.mxu0 0.0
  %64 = vmatpush1.msra.mxu0 0.0
  %65 = vmatprep.subr.mxu0 0.0
  %66 = vmatpush1.msra.mxu0 0.0
  %67 = vmatprep.subr.mxu0 0.0
  %68 = vmatpush1.msra.mxu0 0.0
  %69 = vmatprep.subr.mxu0 0.0
  %70 = vmatpush1.msra.mxu0 %v27
  %71 = vmatprep.subr.mxu0 0.0
  %72 = vmatpush2.msra.mxu0 0.0
  %73 = vmatprep.subr.mxu0 0.0
  %74 = vmatpush2.msra.mxu0 0.0
  %75 = vmatprep.subr.mxu0 0.0
  %76 = vmatpush2.msra.mxu0 0.0
  %77 = vmatprep.subr.mxu0 0.0
  %78 = vmatpush2.msra.mxu0 0.0
  %79 = vmatprep.subr.mxu0 0.0
  %80 = vmatpush2.msra.mxu0 0.0
  %81 = vmatprep.subr.mxu0 0.0
  %82 = vmatpush2.msra.mxu0 0.0
  %83 = vmatprep.subr.mxu0 0.0
  %84 = vmatpush2.msra.mxu0 0.0
  %85 = vmatprep.subr.mxu0 0.0
  %86 = vmatpush2.msra.mxu0 0.0
  %87 = vmatprep.subr.mxu0 0.0
  %88 = vmatpush2.msra.mxu0 0.0
  %89 = vmatprep.subr.mxu0 0.0
  %90 = vmatpush2.msra.mxu0 0.0
  %91 = vmatprep.subr.mxu0 0.0
  %92 = vmatpush2.msra.mxu0 0.0
  %93 = vmatprep.subr.mxu0 0.0
  %94 = vmatpush2.msra.mxu0 0.0
  %95 = vmatprep.subr.mxu0 0.0
  %96 = vmatpush2.msra.mxu0 0.0
  %97 = vmatprep.subr.mxu0 0.0
  %98 = vmatpush2.msra.mxu0 0.0
  %99 = vmatprep.subr.mxu0 0.0
  %100 = vmatpush2.msra.mxu0 0.0
  %101 = vmatprep.subr.mxu0 0.0
  %102 = vmatpush2.msra.mxu0 0.0
  %103 = vmatprep.mubr.f32.mxu0 0.0
  %104 = vmatmul.mubr.f32.gmra.mxu0 %v37
  %v105 = vpop.f32.mrf.mxu0
  %v106 = vadd.f32 %v33, %v105
  %v107 = vpop.f32.mrf.mxu0
  %108 = vdwg.mxu0
  %v109 = vld [vmem:[%s3] sm:$0xff]
  %v110 = vld [vmem:[%s3 + $0x8] sm:$0xff]
  %v111 = vld [vmem:[%s3 + $0x10] sm:$0xff]
  %v112 = vld [vmem:[%s3 + $0x18] sm:$0xff]
  %v113 = vld [vmem:[%s3 + $0x20] sm:$0xff]
  %v114 = vld [vmem:[%s3 + $0x28] sm:$0xff]
  %v115 = vld [vmem:[%s3 + $0x30] sm:$0xff]
  %v116 = vld [vmem:[%s3 + $0x38] sm:$0xff]
  %v117 = vld [vmem:[%s3 + $0x40] sm:$0xff]
  %v118 = vld [vmem:[%s3 + $0x48] sm:$0xff]
  %v119 = vld [vmem:[%s3 + $0x50] sm:$0xff]
  %v120 = vld [vmem:[%s3 + $0x58] sm:$0xff]
  %v121 = vld [vmem:[%s3 + $0x60] sm:$0xff]
  %v122 = vld [vmem:[%s3 + $0x68] sm:$0xff]
  %v123 = vld [vmem:[%s3 + $0x70] sm:$0xff]
  %v124 = vld [vmem:[%s3 + $0x78] sm:$0xff]
  %v125 = vld [vmem:[%s4] sm:$0x1]
  %v127 = vlaneseq
  %v128 = vshrl.u32 %v127, 7
  %v129 = vsub.s32 0, %v128
  %v130 = vrot.slane %v125, %v129
  %132 = vmatprep.subr.mxu0 0.0
  %133 = vmatpush1.msra.mxu0 %v124
  %134 = vmatprep.subr.mxu0 0.0
  %135 = vmatpush1.msra.mxu0 %v123
  %136 = vmatprep.subr.mxu0 0.0
  %137 = vmatpush1.msra.mxu0 %v122
  %138 = vmatprep.subr.mxu0 0.0
  %139 = vmatpush1.msra.mxu0 %v121
  %140 = vmatprep.subr.mxu0 0.0
  %141 = vmatpush1.msra.mxu0 %v120
  %142 = vmatprep.subr.mxu0 0.0
  %143 = vmatpush1.msra.mxu0 %v119
  %144 = vmatprep.subr.mxu0 0.0
  %145 = vmatpush1.msra.mxu0 %v118
  %146 = vmatprep.subr.mxu0 0.0
  %147 = vmatpush1.msra.mxu0 %v117
  %148 = vmatprep.subr.mxu0 0.0
  %149 = vmatpush1.msra.mxu0 %v116
  %150 = vmatprep.subr.mxu0 0.0
  %151 = vmatpush1.msra.mxu0 %v115
  %152 = vmatprep.subr.mxu0 0.0
  %153 = vmatpush1.msra.mxu0 %v114
  %154 = vmatprep.subr.mxu0 0.0
  %155 = vmatpush1.msra.mxu0 %v113
  %156 = vmatprep.subr.mxu0 0.0
  %157 = vmatpush1.msra.mxu0 %v112
  %158 = vmatprep.subr.mxu0 0.0
  %159 = vmatpush1.msra.mxu0 %v111
  %160 = vmatprep.subr.mxu0 0.0
  %161 = vmatpush1.msra.mxu0 %v110
  %162 = vmatprep.subr.mxu0 0.0
  %163 = vmatpush1.msra.mxu0 %v109
  %164 = vmatprep.subr.mxu0 0.0
  %165 = vmatpush2.msra.mxu0 0.0
  %166 = vmatprep.subr.mxu0 0.0
  %167 = vmatpush2.msra.mxu0 0.0
  %168 = vmatprep.subr.mxu0 0.0
  %169 = vmatpush2.msra.mxu0 0.0
  %170 = vmatprep.subr.mxu0 0.0
  %171 = vmatpush2.msra.mxu0 0.0
  %172 = vmatprep.subr.mxu0 0.0
  %173 = vmatpush2.msra.mxu0 0.0
  %174 = vmatprep.subr.mxu0 0.0
  %175 = vmatpush2.msra.mxu0 0.0
  %176 = vmatprep.subr.mxu0 0.0
  %177 = vmatpush2.msra.mxu0 0.0
  %178 = vmatprep.subr.mxu0 0.0
  %179 = vmatpush2.msra.mxu0 0.0
  %180 = vmatprep.subr.mxu0 0.0
  %181 = vmatpush2.msra.mxu0 0.0
  %182 = vmatprep.subr.mxu0 0.0
  %183 = vmatpush2.msra.mxu0 0.0
  %184 = vmatprep.subr.mxu0 0.0
  %185 = vmatpush2.msra.mxu0 0.0
  %186 = vmatprep.subr.mxu0 0.0
  %187 = vmatpush2.msra.mxu0 0.0
  %188 = vmatprep.subr.mxu0 0.0
  %189 = vmatpush2.msra.mxu0 0.0
  %190 = vmatprep.subr.mxu0 0.0
  %191 = vmatpush2.msra.mxu0 0.0
  %192 = vmatprep.subr.mxu0 0.0
  %193 = vmatpush2.msra.mxu0 0.0
  %194 = vmatprep.subr.mxu0 0.0
  %195 = vmatpush2.msra.mxu0 0.0
  %196 = vmatprep.mubr.f32.mxu0 0.0
  %197 = vmatmul.mubr.f32.gmra.mxu0 %v106
  %v198 = vpop.f32.mrf.mxu0
  %v199 = vadd.f32 %v130, %v198
  %v200 = vpop.f32.mrf.mxu0
  %201 = vdwg.mxu0
  %v202 = vld [vmem:[%s5] sm:$0xff]
  %v203 = vld [vmem:[%s5 + $0x8] sm:$0xff]
  %v204 = vld [vmem:[%s5 + $0x10] sm:$0xff]
  %v205 = vld [vmem:[%s5 + $0x18] sm:$0xff]
  %v206 = vld [vmem:[%s5 + $0x20] sm:$0xff]
  %v207 = vld [vmem:[%s5 + $0x28] sm:$0xff]
  %v208 = vld [vmem:[%s5 + $0x30] sm:$0xff]
  %v209 = vld [vmem:[%s5 + $0x38] sm:$0xff]
  %v210 = vld [vmem:[%s5 + $0x40] sm:$0xff]
  %v211 = vld [vmem:[%s5 + $0x48] sm:$0xff]
  %v212 = vld [vmem:[%s5 + $0x50] sm:$0xff]
  %v213 = vld [vmem:[%s5 + $0x58] sm:$0xff]
  %v214 = vld [vmem:[%s5 + $0x60] sm:$0xff]
  %v215 = vld [vmem:[%s5 + $0x68] sm:$0xff]
  %v216 = vld [vmem:[%s5 + $0x70] sm:$0xff]
  %v217 = vld [vmem:[%s5 + $0x78] sm:$0xff]
  %v218 = vld [vmem:[%s6] sm:$0x1]
  %v220 = vlaneseq
  %v221 = vshrl.u32 %v220, 7
  %v222 = vsub.s32 0, %v221
  %v223 = vrot.slane %v218, %v222
  %225 = vmatprep.subr.mxu0 0.0
  %226 = vmatpush1.msra.mxu0 %v217
  %227 = vmatprep.subr.mxu0 0.0
  %228 = vmatpush1.msra.mxu0 %v216
  %229 = vmatprep.subr.mxu0 0.0
  %230 = vmatpush1.msra.mxu0 %v215
  %231 = vmatprep.subr.mxu0 0.0
  %232 = vmatpush1.msra.mxu0 %v214
  %233 = vmatprep.subr.mxu0 0.0
  %234 = vmatpush1.msra.mxu0 %v213
  %235 = vmatprep.subr.mxu0 0.0
  %236 = vmatpush1.msra.mxu0 %v212
  %237 = vmatprep.subr.mxu0 0.0
  %238 = vmatpush1.msra.mxu0 %v211
  %239 = vmatprep.subr.mxu0 0.0
  %240 = vmatpush1.msra.mxu0 %v210
  %241 = vmatprep.subr.mxu0 0.0
  %242 = vmatpush1.msra.mxu0 %v209
  %243 = vmatprep.subr.mxu0 0.0
  %244 = vmatpush1.msra.mxu0 %v208
  %245 = vmatprep.subr.mxu0 0.0
  %246 = vmatpush1.msra.mxu0 %v207
  %247 = vmatprep.subr.mxu0 0.0
  %248 = vmatpush1.msra.mxu0 %v206
  %249 = vmatprep.subr.mxu0 0.0
  %250 = vmatpush1.msra.mxu0 %v205
  %251 = vmatprep.subr.mxu0 0.0
  %252 = vmatpush1.msra.mxu0 %v204
  %253 = vmatprep.subr.mxu0 0.0
  %254 = vmatpush1.msra.mxu0 %v203
  %255 = vmatprep.subr.mxu0 0.0
  %256 = vmatpush1.msra.mxu0 %v202
  %257 = vmatprep.subr.mxu0 0.0
  %258 = vmatpush2.msra.mxu0 0.0
  %259 = vmatprep.subr.mxu0 0.0
  %260 = vmatpush2.msra.mxu0 0.0
  %261 = vmatprep.subr.mxu0 0.0
  %262 = vmatpush2.msra.mxu0 0.0
  %263 = vmatprep.subr.mxu0 0.0
  %264 = vmatpush2.msra.mxu0 0.0
  %265 = vmatprep.subr.mxu0 0.0
  %266 = vmatpush2.msra.mxu0 0.0
  %267 = vmatprep.subr.mxu0 0.0
  %268 = vmatpush2.msra.mxu0 0.0
  %269 = vmatprep.subr.mxu0 0.0
  %270 = vmatpush2.msra.mxu0 0.0
  %271 = vmatprep.subr.mxu0 0.0
  %272 = vmatpush2.msra.mxu0 0.0
  %273 = vmatprep.subr.mxu0 0.0
  %274 = vmatpush2.msra.mxu0 0.0
  %275 = vmatprep.subr.mxu0 0.0
  %276 = vmatpush2.msra.mxu0 0.0
  %277 = vmatprep.subr.mxu0 0.0
  %278 = vmatpush2.msra.mxu0 0.0
  %279 = vmatprep.subr.mxu0 0.0
  %280 = vmatpush2.msra.mxu0 0.0
  %281 = vmatprep.subr.mxu0 0.0
  %282 = vmatpush2.msra.mxu0 0.0
  %283 = vmatprep.subr.mxu0 0.0
  %284 = vmatpush2.msra.mxu0 0.0
  %285 = vmatprep.subr.mxu0 0.0
  %286 = vmatpush2.msra.mxu0 0.0
  %287 = vmatprep.subr.mxu0 0.0
  %288 = vmatpush2.msra.mxu0 0.0
  %289 = vmatprep.mubr.f32.mxu0 0.0
  %290 = vmatmul.mubr.f32.gmra.mxu0 %v199
  %v291 = vpop.f32.mrf.mxu0
  %v292 = vadd.f32 %v223, %v291
  %v293 = vpop.f32.mrf.mxu0
  %294 = vdwg.mxu0
  %295 = vst [vmem:[%s7] sm:$0xff] %v292
  // Predicated region
  $region30: #{mlp_forward.1} parent=0 // pred_check
    _
  $region31: #{mlp_forward.1} parent=0 // pred_check_branch
    %297 = sbr.rel (0) target = $region33
  $region32: #{mlp_forward.1} parent=0 // pred_region
    _
  $region33: #{mlp_forward.1} parent=0 // pred_fallthru
    _
  // Predicated region
  $region34: #{mlp_forward.1} parent=0 // pred_check
    _
  $region35: #{mlp_forward.1} parent=0 // pred_check_branch
    %299 = sbr.rel (0) target = $region37
  $region36: #{mlp_forward.1} parent=0 // pred_region
    _
  $region37: #{mlp_forward.1} parent=0 // pred_fallthru
    _

</llo_original>
